<compile_context>
chip_gen: v5e
topology: v5e:2x2
jax: 0.10.0
libtpu: 0.0.40
codegen_flags: <defaults>
</compile_context>

<pallas_src>
import functools

import jax
import jax.numpy as jnp
from jax.experimental import pallas as pl
from jax.experimental.pallas import tpu as pltpu


def _lsr_tile_kernel(x_ref, t_ref, out_ref, *, epsilon: float, n_total: int, tn: int):
    """One batch tile: emit the partial sum of the smoothed NLL over valid rows."""
    i = pl.program_id(0)

    x = x_ref[...].astype(jnp.float32)            # (TN, C)  f32 compute (v5e-safe)
    t = t_ref[...]                                # (TN, 1)  int32
    rows, c = x.shape

    # Numerically stable row-wise log-sum-exp.
    m = jnp.max(x, axis=1, keepdims=True)                                   # (TN, 1)
    lse = m + jnp.log(jnp.sum(jnp.exp(x - m), axis=1, keepdims=True))       # (TN, 1)

    # Folded smoothed one-hot target (no explicit onehot / logp temporaries):
    #   loss_i = (1-eps)*(lse - x_t) + (eps/C)*(C*lse - sum_x)
    col = jax.lax.broadcasted_iota(jnp.int32, (rows, c), 1)
    x_t = jnp.sum(jnp.where(col == t, x, 0.0), axis=1, keepdims=True)       # (TN, 1)
    sum_x = jnp.sum(x, axis=1, keepdims=True)                               # (TN, 1)

    per_row = (1.0 - epsilon) * (lse - x_t) + (epsilon / c) * (c * lse - sum_x)

    # Mask rows past the true batch size (padded tail tile); sum the rest.
    row_ids = jax.lax.broadcasted_iota(jnp.int32, (rows, 1), 0) + i * tn
    per_row = jnp.where(row_ids < n_total, per_row, 0.0)

    tile_sum = jnp.sum(per_row, axis=0, keepdims=True)      # (1, 1)
    out_ref[...] = tile_sum[None]                            # (1, 1, 1) full store


def lsr_loss(inputs: jax.Array, targets: jax.Array, epsilon: float = 0.1) -> jax.Array:
    """Pallas implementation of LSRLoss.forward.

    inputs:  (N, C) float logits.
    targets: (N,) integer class indices in [0, C).
    Returns scalar float32 loss.
    """
    n, c = inputs.shape
    itemsize = inputs.dtype.itemsize
    t2 = targets.astype(jnp.int32).reshape(n, 1)

    # Batch-tile sizing: ~2 MiB of logits per block (Pallas double-buffers it),
    # multiple of 8 sublanes, capped at 1024 rows -- fits comfortably under the
    # scoped-VMEM limits on v5e/v6e/v7x while amortizing per-grid-step overhead.
    target_block_bytes = 2 * 1024 * 1024
    tn = (target_block_bytes // max(1, c * itemsize)) // 8 * 8
    tn = max(8, min(1024, tn))
    if n <= 8:
        tn = n                      # block == full batch dim (allowed even if < 8)
    else:
        tn = min(tn, (n // 8) * 8)  # keep block rows a multiple of 8 and <= N
    num_tiles = (n + tn - 1) // tn

    cost = pl.CostEstimate(
        flops=6 * n * c,
        transcendentals=n * c,
        bytes_accessed=n * c * itemsize + n * 4 + num_tiles * 4,
    )

    partial = pl.pallas_call(
        functools.partial(_lsr_tile_kernel, epsilon=float(epsilon), n_total=n, tn=tn),
        out_shape=jax.ShapeDtypeStruct((num_tiles, 1, 1), jnp.float32),
        grid=(num_tiles,),
        in_specs=[
            pl.BlockSpec((tn, c), lambda i: (i, 0)),   # logits tile
            pl.BlockSpec((tn, 1), lambda i: (i, 0)),   # target ids tile
        ],
        out_specs=pl.BlockSpec((1, 1, 1), lambda i: (i, 0, 0)),  # per-tile partial sum
        compiler_params=pltpu.CompilerParams(
            dimension_semantics=("parallel",),
            vmem_limit_bytes=48 * 1024 * 1024,
        ),
        cost_estimate=cost,
    )(inputs, t2)

    # Final mean over the *global* batch size (tiny JAX-side reduction).
    return jnp.sum(partial) / jnp.float32(n)


def lsr_loss_ref(inputs, targets, epsilon=0.1):
    # Pure-JAX reference for correctness check.
    n, c = inputs.shape
    logp = jax.nn.log_softmax(inputs.astype(jnp.float32), axis=1)
    onehot = jax.nn.one_hot(targets, c, dtype=jnp.float32) * (1.0 - epsilon) + epsilon / c
    return jnp.mean(-jnp.sum(onehot * logp, axis=1))


if __name__ == "__main__":
    key = jax.random.PRNGKey(0)
    k1, k2, k3, k4 = jax.random.split(key, 4)

    # Small primary case matching the (batch, num_classes) contract.
    N, C = 8, 32
    logits = jax.random.normal(k1, (N, C), dtype=jnp.float32)
    labels = jax.random.randint(k2, (N,), 0, C, dtype=jnp.int32)

    loss = lsr_loss(logits, labels, epsilon=0.1)
    jax.block_until_ready(loss)
    ref = lsr_loss_ref(logits, labels, epsilon=0.1)
    assert jnp.allclose(loss, ref, atol=1e-5, rtol=1e-5), (loss, ref)

    # Uneven batch: exercises the multi-tile grid and tail-row masking.
    N2, C2 = 20, 96
    logits2 = jax.random.normal(k3, (N2, C2), dtype=jnp.float32)
    labels2 = jax.random.randint(k4, (N2,), 0, C2, dtype=jnp.int32)

    loss2 = lsr_loss(logits2, labels2, epsilon=0.1)
    jax.block_until_ready(loss2)
    ref2 = lsr_loss_ref(logits2, labels2, epsilon=0.1)
    assert jnp.allclose(loss2, ref2, atol=1e-5, rtol=1e-5), (loss2, ref2)

    print("KERNEL_OK")
</pallas_src>

<mosaic_0001>
module attributes {stable_mosaic.version = 11 : i64} {
  func.func @_lsr_tile_kernel(%arg0: i32, %arg1: memref<8x32xf32, #tpu.memory_space<vmem>>, %arg2: memref<8x1xi32, #tpu.memory_space<vmem>>, %arg3: memref<1x1x1xf32, #tpu.memory_space<vmem>>) attributes {dimension_semantics = [#tpu.dimension_semantics<parallel>], iteration_bounds = array<i64: 1>, scalar_prefetch = 0 : i64, scratch_operands = 0 : i64, tpu.core_type = #tpu.core_type<tc>, window_params = [{transform_indices = @transform_0, window_bounds = array<i64: 8, 32>}, {transform_indices = @transform_1, window_bounds = array<i64: 8, 1>}, {transform_indices = @transform_2, window_bounds = array<i64: 1, 1, 1>}]} {
    %c0 = arith.constant 0 : index
    %c0_0 = arith.constant 0 : index
    %0 = vector.load %arg1[%c0, %c0_0] : memref<8x32xf32, #tpu.memory_space<vmem>>, vector<8x32xf32>
    %c0_1 = arith.constant 0 : index
    %c0_2 = arith.constant 0 : index
    %1 = vector.load %arg2[%c0_1, %c0_2] : memref<8x1xi32, #tpu.memory_space<vmem>>, vector<8x1xi32>
    %cst = arith.constant dense<0xFF800000> : vector<8xf32>
    %2 = vector.multi_reduction <maximumf>, %0, %cst [1] : vector<8x32xf32> to vector<8xf32>
    %3 = vector.shape_cast %2 : vector<8xf32> to vector<8x1xf32>
    %4 = vector.broadcast %3 : vector<8x1xf32> to vector<8x32xf32>
    %5 = arith.subf %0, %4 : vector<8x32xf32>
    %6 = math.exp %5 : vector<8x32xf32>
    %cst_3 = arith.constant dense<0.000000e+00> : vector<8xf32>
    %7 = vector.multi_reduction <add>, %6, %cst_3 [1] : vector<8x32xf32> to vector<8xf32>
    %8 = vector.shape_cast %7 : vector<8xf32> to vector<8x1xf32>
    %9 = math.log %8 : vector<8x1xf32>
    %10 = arith.addf %3, %9 : vector<8x1xf32>
    %11 = tpu.iota {dimensions = array<i32: 1>} : vector<8x32xi32>
    %12 = vector.broadcast %1 : vector<8x1xi32> to vector<8x32xi32>
    %13 = arith.cmpi eq, %11, %12 : vector<8x32xi32>
    %cst_4 = arith.constant 0.000000e+00 : f32
    %14 = vector.broadcast %cst_4 : f32 to vector<8x32xf32>
    %15 = arith.select %13, %0, %14 : vector<8x32xi1>, vector<8x32xf32>
    %cst_5 = arith.constant dense<0.000000e+00> : vector<8xf32>
    %16 = vector.multi_reduction <add>, %15, %cst_5 [1] : vector<8x32xf32> to vector<8xf32>
    %17 = vector.shape_cast %16 : vector<8xf32> to vector<8x1xf32>
    %cst_6 = arith.constant dense<0.000000e+00> : vector<8xf32>
    %18 = vector.multi_reduction <add>, %0, %cst_6 [1] : vector<8x32xf32> to vector<8xf32>
    %19 = vector.shape_cast %18 : vector<8xf32> to vector<8x1xf32>
    %20 = arith.subf %10, %17 : vector<8x1xf32>
    %cst_7 = arith.constant 0.899999976 : f32
    %21 = vector.broadcast %cst_7 : f32 to vector<8x1xf32>
    %22 = arith.mulf %21, %20 : vector<8x1xf32>
    %cst_8 = arith.constant 3.200000e+01 : f32
    %23 = vector.broadcast %cst_8 : f32 to vector<8x1xf32>
    %24 = arith.mulf %23, %10 : vector<8x1xf32>
    %25 = arith.subf %24, %19 : vector<8x1xf32>
    %cst_9 = arith.constant 3.125000e-03 : f32
    %26 = vector.broadcast %cst_9 : f32 to vector<8x1xf32>
    %27 = arith.mulf %26, %25 : vector<8x1xf32>
    %28 = arith.addf %22, %27 : vector<8x1xf32>
    %29 = tpu.iota {dimensions = array<i32: 0>} : vector<8x1xi32>
    %c8_i32 = arith.constant 8 : i32
    %30 = arith.muli %arg0, %c8_i32 : i32
    %31 = vector.broadcast %30 : i32 to vector<8x1xi32>
    %32 = arith.addi %29, %31 : vector<8x1xi32>
    %c8_i32_10 = arith.constant 8 : i32
    %33 = vector.broadcast %c8_i32_10 : i32 to vector<8x1xi32>
    %34 = arith.cmpi slt, %32, %33 : vector<8x1xi32>
    %cst_11 = arith.constant 0.000000e+00 : f32
    %35 = vector.broadcast %cst_11 : f32 to vector<8x1xf32>
    %36 = arith.select %34, %28, %35 : vector<8x1xi1>, vector<8x1xf32>
    %cst_12 = arith.constant dense<0.000000e+00> : vector<1xf32>
    %37 = vector.multi_reduction <add>, %36, %cst_12 [0] : vector<8x1xf32> to vector<1xf32>
    %38 = vector.shape_cast %37 : vector<1xf32> to vector<1x1xf32>
    %39 = vector.shape_cast %38 : vector<1x1xf32> to vector<1x1x1xf32>
    %c0_13 = arith.constant 0 : index
    %c0_14 = arith.constant 0 : index
    %c0_15 = arith.constant 0 : index
    %40 = vector.load %arg3[%c0_13, %c0_14, %c0_15] : memref<1x1x1xf32, #tpu.memory_space<vmem>>, vector<1x1x1xf32>
    tpu.vector_store %arg3[%c0_13, %c0_14, %c0_15], %39 {strides = array<i32>} : memref<1x1x1xf32, #tpu.memory_space<vmem>>, vector<1x1x1xf32>,
    return
  }
  func.func @transform_0(%arg0: i32) -> (i32, i32) {
    %c0_i32 = arith.constant 0 : i32
    %c0_i32_0 = arith.constant 0 : i32
    return %arg0, %c0_i32 : i32, i32
  }
  func.func @transform_1(%arg0: i32) -> (i32, i32) {
    %c0_i32 = arith.constant 0 : i32
    %c0_i32_0 = arith.constant 0 : i32
    return %arg0, %c0_i32 : i32, i32
  }
  func.func @transform_2(%arg0: i32) -> (i32, i32, i32) {
    %c0_i32 = arith.constant 0 : i32
    %c0_i32_0 = arith.constant 0 : i32
    %c0_i32_1 = arith.constant 0 : i32
    return %arg0, %c0_i32, %c0_i32_0 : i32, i32, i32
  }
}

</mosaic_0001>

<llo_original>
// kernel: tpu_custom_call.1
$region0: #{tpu_custom_call.1}
  #allocation0 [shape = 'u32[]', space=smem, size = 0x4, offset = 0x4, fixed_abs, tag = 'smem constant byte address 0x4 - core index']
  #allocation1 [shape = 'u32[72,128]{1,0:T(1,128)}', space=vmem, size = 0x9000, scoped, tag = 'internal scratch']
  %s0 = inlined_call_operand.vmem [shape: f32[8,32], index: 0, kind: input, shape index: {}]
  %s1 = inlined_call_operand.vmem [shape: s32[8,1], index: 1, kind: input, shape index: {}]
  %s2 = inlined_call_operand.hbm [shape: f32[1,1,1], index: 2, kind: output, shape index: {}]
  %s3 = sld [smem:[#allocation0]]
  $region18: #{tpu_custom_call.1} parent=0
    _
  %s5 = ssub.s32 1, %s3
  %s6 = scalar_select 0, %s5, %s3
  $region1: #{tpu_custom_call.1} parent=0
    #allocation2 [shape = 'u8[512]{0}', space=vmem, size = 0x400, scoped, tag = 'output window, operand 0, single buffered']
    #allocation3 [shape = 's32[1]{0}', space=sflag, size = 0x4, scoped, tag = 'scoped memory for tpu_custom_call.1']
    %7 = vsyncpa [#allocation3], 0
    // Predicated region
    $region2: #{tpu_custom_call.1} parent=1 // pred_check
      _
    $region3: #{tpu_custom_call.1} parent=1 // pred_check_branch
      %9 = sbr.rel (0) target = $region5
    $region4: #{tpu_custom_call.1} parent=1 // pred_region
      _
    $region5: #{tpu_custom_call.1} parent=1 // pred_fallthru
      _
    // Predicated region
    $region6: #{tpu_custom_call.1} parent=1 // pred_check
      _
    $region7: #{tpu_custom_call.1} parent=1 // pred_check_branch
      %11 = sbr.rel (0) target = $region9
    $region8: #{tpu_custom_call.1} parent=1 // pred_region
      _
    $region9: #{tpu_custom_call.1} parent=1 // pred_fallthru
      _
    %v12 = vld [vmem:[%s0] sm:$0xff]
    %v13 = vld [vmem:[%s1] sm:$0xff]
    %vm14 = vcmask 261120
    %v15 = vsel %vm14, %v12, -inf
    %16 = vmax.xlane.f32.xlu0 %v15
    %v17 = vpop.xlane.xlu0 %16
    %v18 = vsub.f32 %v12, %v17
    %v19 = vmul.f32 %v18, 1.442695
    %v20 = vpow.pop %v19
    %v21 = vsel %vm14, %v20, 0.0
    %22 = vadd.xlane.f32.xlu0 %v21
    %v23 = vpop.xlane.xlu0 %22
    %v24 = vlog2.pop %v23
    %v25 = vmul.f32 %v24, 0.6931472
    %v26 = vadd.f32 %v17, %v25
    %v27 = vlaneseq
    %v28 = vand.u32 %v27, 127
    %29 = vset.pattern.permute.xlu0 0
    %30 = vperm.xlu0 %29, %v13
    %v31 = vpop.permute.xlu0 %30
    %vm32 = vcmp.eq.s32.totalorder %v28, %v31
    %v33 = vsel %vm32, %v12, 0.0
    %v34 = vsel %vm14, %v33, 0.0
    %35 = vadd.xlane.f32.xlu0 %v34
    %v36 = vpop.xlane.xlu0 %35
    %v37 = vsel %vm14, %v12, 0.0
    %38 = vadd.xlane.f32.xlu0 %v37
    %v39 = vpop.xlane.xlu0 %38
    %v40 = vsub.f32 %v26, %v36
    %v41 = vmul.f32 %v40, 0.9
    %v42 = vmul.f32 %v26, 32.0
    %v43 = vsub.f32 %v42, %v39
    %v44 = vmul.f32 %v43, 0.003125
    %v45 = vadd.f32 %v41, %v44
    %v46 = vlaneseq
    %v47 = vshrl.u32 %v46, 7
    %s48 = smul.u32 0, 8
    %v49 = vstv %s48
    %v50 = vadd.s32 %v47, %v49
    %vm51 = vcmp.lt.s32.totalorder %v50, 8
    %v52 = vsel %vm51, %v45, 0.0
    %v53 = vrot.slane %v52, 4
    %v54 = vadd.f32 %v52, %v53
    %v55 = vrot.slane %v54, 2
    %v56 = vadd.f32 %v54, %v55
    %v57 = vrot.slane %v56, 1
    %v58 = vadd.f32 %v56, %v57
    %vm59 = vcmask 0
    %60 = vst.msk [vmem:[#allocation2] sm:$0x1] %vm59, %v58
    // Predicated region
    $region10: #{tpu_custom_call.1} parent=1 // pred_check
      _
    $region11: #{tpu_custom_call.1} parent=1 // pred_check_branch
      %62 = sbr.rel (0) target = $region13
    $region12: #{tpu_custom_call.1} parent=1 // pred_region
      %64 = vsyncadd [#allocation3], 0
      %s66 = sshll.u32 [#allocation2], 4
      %s67 = int_to_ptr.vmem [resolvable:$true] %s66
      %s68 = sshll.u32 %s2, 4
      %s69 = int_to_ptr.hbm [resolvable:$true] %s68
      %71 = dma.vmem_to_hbm [thread:$0]  %s67, 16, %s69, [#allocation3]
    $region13: #{tpu_custom_call.1} parent=1 // pred_fallthru
      _
    // Predicated region
    $region14: #{tpu_custom_call.1} parent=1 // pred_check
      _
    $region15: #{tpu_custom_call.1} parent=1 // pred_check_branch
      %73 = sbr.rel (0) target = $region17
    $region16: #{tpu_custom_call.1} parent=1 // pred_region
      %75 = dma.done [#allocation3], 16
    $region17: #{tpu_custom_call.1} parent=1 // pred_fallthru
      _
    %76 = vsyncpa [#allocation3], 1

</llo_original>
